<compile_context>
chip_gen: v7x
topology: tpu7x:2x2x1
jax: 0.10.0
libtpu: 0.0.40
codegen_flags: <defaults>
</compile_context>

<pallas_src>
import functools

import jax
import jax.numpy as jnp
from jax.experimental import pallas as pl
from jax.experimental.pallas import tpu as pltpu


def _round_up(a, b):
    return ((a + b - 1) // b) * b


def _lane_width():
    """256 lanes on v6e/v7x (2x256x256 MXU); 128 on v5e and older (128x128 MXU)."""
    try:
        kind = jax.devices()[0].device_kind.lower()
    except Exception:
        return 256
    if any(tag in kind for tag in ("v2", "v3", "v4", "v5")):
        return 128
    return 256


def _ffn_kernel(x_ref, w_ref, b_ref, g_ref, bt_ref, s_ref, o_ref,
                *, skip, use_ln, eps, skip_pad):
    # Linear on the MXU.  Operand dtype matches the input (bf16 stays bf16 ->
    # single-pass matmul); accumulation is always f32.
    h = jnp.dot(x_ref[...], w_ref[...], preferred_element_type=jnp.float32)
    h = h + b_ref[...].astype(jnp.float32)

    # sigmoid(z) = 0.5 * tanh(z / 2) + 0.5  -> single EUP op, no VALU divide.
    h = 0.5 * jnp.tanh(0.5 * h) + 0.5

    # Dropout: identity in eval mode.
    # TODO(synk): training-mode dropout would need pltpu.prng_random_bits masking.

    if skip:  # only valid when input_dim == output_dim
        x = x_ref[...].astype(jnp.float32)
        if skip_pad:
            x = jnp.pad(x, ((0, 0), (0, skip_pad)))
        h = h + x

    if use_ln:
        # Per-logical-row (per lane segment) LayerNorm, lane-dense on the MXU:
        # s = blockdiag(ones(d,d) / d) so h @ s broadcasts each segment's mean
        # back to every lane of that segment.  Variance as E[h^2] - mean^2 lets
        # both stat matmuls issue back-to-back (no mean->diff dependency).
        s = s_ref[...]
        mean = jnp.dot(h, s, preferred_element_type=jnp.float32)
        mean_sq = jnp.dot(h * h, s, preferred_element_type=jnp.float32)
        var = mean_sq - mean * mean
        h = (h - mean) * jax.lax.rsqrt(var + eps)
        h = h * g_ref[...].astype(jnp.float32) + bt_ref[...].astype(jnp.float32)

    o_ref[...] = h.astype(o_ref.dtype)


def single_feed_forward_nn(x, w, b, gamma, beta, *,
                           skip_connection=True, use_layernorm=True,
                           eps=1e-5, rows_per_tile=4096):
    """x: [..., D_in]; w: [D_in, D_out] (transposed PyTorch weight); b/gamma/beta: [D_out]."""
    d_in = x.shape[-1]
    d_out = w.shape[-1]
    lead_shape = x.shape[:-1]

    x2 = x.reshape(-1, d_in)
    if x2.dtype != jnp.bfloat16 and x2.dtype != jnp.float32:
        x2 = x2.astype(jnp.float32)
    mm_dtype = jnp.bfloat16 if x2.dtype == jnp.bfloat16 else jnp.float32
    n = x2.shape[0]
    skip = bool(skip_connection) and (d_in == d_out)

    # Lane-packing factor: `pack` logical rows per register row.
    lane = _lane_width()
    if d_in == d_out and lane % d_in == 0:
        pack = lane // d_in
    elif d_in == d_out and 128 % d_in == 0:
        pack = 128 // d_in
    else:
        pack = 1

    if pack > 1:
        dpi = pack * d_in
        dpo = pack * d_out
        eye = jnp.eye(pack, dtype=jnp.float32)
        w_p = jnp.kron(eye, w.astype(jnp.float32)).astype(mm_dtype)
        b_p = jnp.tile(b.astype(jnp.float32).reshape(1, d_out), (1, pack))
        g_p = jnp.tile(gamma.astype(jnp.float32).reshape(1, d_out), (1, pack))
        bt_p = jnp.tile(beta.astype(jnp.float32).reshape(1, d_out), (1, pack))
        # Segment-mean matrix (1/d_out folded in -> rides the MXU, no VALU rescale).
        s_p = jnp.kron(eye, jnp.full((d_out, d_out), 1.0 / d_out, jnp.float32))
        skip_pad = 0

        # Only pad enough rows to make n a multiple of pack (needed for the free
        # row-major regrouping); NO tile-alignment padding -- the grid is
        # cdiv-sized and the partial tail block's OOB rows are dropped.
        rem = n % pack
        n_pad = n if rem == 0 else n + (pack - rem)
        if n_pad != n:
            x2 = jnp.pad(x2, ((0, n_pad - n), (0, 0)))
        np_rows = n_pad // pack
        x_in = x2.reshape(np_rows, dpi)
    else:
        # Generic fallback (e.g. d_in != d_out): keep the input last dim as-is
        # (full-dim block is legal) but pad the OUTPUT columns to a multiple of
        # 128 so stores are full-lane (no masked vst.msk) and the MXU columns
        # are dense.  Padded columns are garbage and sliced off in the wrapper.
        dpi = d_in
        dpo = _round_up(d_out, 128)
        pad_c = dpo - d_out
        w_p = jnp.pad(w.astype(jnp.float32), ((0, 0), (0, pad_c))).astype(mm_dtype)
        b_p = jnp.pad(b.astype(jnp.float32), (0, pad_c)).reshape(1, dpo)
        g_p = jnp.pad(gamma.astype(jnp.float32), (0, pad_c)).reshape(1, dpo)
        bt_p = jnp.pad(beta.astype(jnp.float32), (0, pad_c)).reshape(1, dpo)
        # Only the real d_out columns contribute to the LN statistics.
        s_p = jnp.zeros((dpo, dpo), jnp.float32).at[:d_out, :].set(1.0 / d_out)
        skip_pad = (dpo - d_in) if skip else 0
        np_rows = n
        x_in = x2

    # Row tile: multiple of 16 sublanes (bf16-friendly), capped by a VMEM
    # budget (default ~4K logical rows keeps the f32 epilogue temporaries well
    # under the 48 MiB limit); small inputs use a single full-extent block.
    tp_max = max(16, ((max(rows_per_tile, 16) // pack) // 16) * 16)
    tp = np_rows if np_rows <= tp_max else tp_max
    grid = pl.cdiv(np_rows, tp)

    kernel = functools.partial(
        _ffn_kernel,
        skip=skip,
        use_ln=bool(use_layernorm),
        eps=float(eps),
        skip_pad=skip_pad,
    )

    out_p = pl.pallas_call(
        kernel,
        out_shape=jax.ShapeDtypeStruct((np_rows, dpo), x_in.dtype),
        grid_spec=pltpu.PrefetchScalarGridSpec(
            num_scalar_prefetch=0,
            grid=(grid,),
            in_specs=[
                pl.BlockSpec((tp, dpi), lambda i: (i, 0)),    # packed activations
                pl.BlockSpec((dpi, dpo), lambda i: (0, 0)),   # block-diag weight (resident)
                pl.BlockSpec((1, dpo), lambda i: (0, 0)),     # bias (tiled)
                pl.BlockSpec((1, dpo), lambda i: (0, 0)),     # LN gamma (tiled)
                pl.BlockSpec((1, dpo), lambda i: (0, 0)),     # LN beta (tiled)
                pl.BlockSpec((dpo, dpo), lambda i: (0, 0)),   # segment-mean matrix
            ],
            out_specs=pl.BlockSpec((tp, dpo), lambda i: (i, 0)),
        ),
        compiler_params=pltpu.CompilerParams(
            dimension_semantics=("parallel",),
            vmem_limit_bytes=48 * 1024 * 1024,
        ),
    )(x_in, w_p, b_p, g_p, bt_p, s_p)

    if pack > 1:
        out = out_p.reshape(np_rows * pack, d_out)[:n]
    else:
        out = out_p[:, :d_out]
    return out.reshape(*lead_shape, d_out)


def _reference(x, w, b, gamma, beta, *, skip_connection=True,
               use_layernorm=True, eps=1e-5):
    x = x.astype(jnp.float32)
    h = x @ w + b
    h = jax.nn.sigmoid(h)
    if skip_connection and x.shape[-1] == w.shape[-1]:
        h = h + x
    if use_layernorm:
        mean = jnp.mean(h, axis=-1, keepdims=True)
        var = jnp.mean((h - mean) ** 2, axis=-1, keepdims=True)
        h = (h - mean) / jnp.sqrt(var + eps)
        h = h * gamma + beta
    return h


if __name__ == "__main__":
    key = jax.random.PRNGKey(0)
    k1, k2, k3, k4, k5, k6 = jax.random.split(key, 6)

    # --- Test 1: HyperRoad config (input_dim == output_dim, skip + layernorm) ---
    batch, seq, d = 2, 8, 32
    x = jax.random.normal(k1, (batch, seq, d), dtype=jnp.float32)

    limit = (6.0 / (d + d)) ** 0.5                 # xavier_uniform
    w = jax.random.uniform(k2, (d, d), minval=-limit, maxval=limit,
                           dtype=jnp.float32)      # stored as [D_in, D_out]
    b_lim = 1.0 / (d ** 0.5)
    b = jax.random.uniform(k3, (d,), minval=-b_lim, maxval=b_lim,
                           dtype=jnp.float32)
    gamma = jnp.ones((d,), jnp.float32)
    beta = jnp.zeros((d,), jnp.float32)

    out = single_feed_forward_nn(x, w, b, gamma, beta,
                                 skip_connection=True, use_layernorm=True)
    out = jax.block_until_ready(out)
    ref = _reference(x, w, b, gamma, beta,
                     skip_connection=True, use_layernorm=True)
    assert out.shape == (batch, seq, d)
    assert jnp.allclose(out, ref, atol=1e-4, rtol=1e-4), "test 1 mismatch"

    # --- Test 2: generic path (d_in != d_out -> padded lane-dense output, no skip) ---
    d_in2, d_out2 = 32, 48
    x2 = jax.random.normal(k4, (3, 7, d_in2), dtype=jnp.float32)
    lim2 = (6.0 / (d_in2 + d_out2)) ** 0.5
    w2 = jax.random.uniform(k5, (d_in2, d_out2), minval=-lim2, maxval=lim2,
                            dtype=jnp.float32)
    b2 = jax.random.uniform(k6, (d_out2,), minval=-0.1, maxval=0.1,
                            dtype=jnp.float32)
    g2 = jnp.ones((d_out2,), jnp.float32)
    bt2 = jnp.zeros((d_out2,), jnp.float32)

    out2 = single_feed_forward_nn(x2, w2, b2, g2, bt2,
                                  skip_connection=True, use_layernorm=True)
    out2 = jax.block_until_ready(out2)
    ref2 = _reference(x2, w2, b2, g2, bt2,
                      skip_connection=True, use_layernorm=True)
    assert out2.shape == (3, 7, d_out2)
    assert jnp.allclose(out2, ref2, atol=1e-4, rtol=1e-4), "test 2 mismatch"

    # --- Test 3: bf16 input, ragged row count, small tile -> multi-step cdiv grid
    #             with a partial tail block (exercises bf16 single-pass matmul). ---
    x3 = jax.random.normal(k4, (5, 37, d), dtype=jnp.bfloat16)
    out3 = single_feed_forward_nn(x3, w, b, gamma, beta,
                                  skip_connection=True, use_layernorm=True,
                                  rows_per_tile=80)
    out3 = jax.block_until_ready(out3)
    ref3 = _reference(x3, w, b, gamma, beta,
                      skip_connection=True, use_layernorm=True)
    assert out3.shape == (5, 37, d)
    assert out3.dtype == jnp.bfloat16
    assert jnp.allclose(out3.astype(jnp.float32), ref3, atol=5e-2, rtol=5e-2), \
        "test 3 mismatch"

    print("KERNEL_OK")
</pallas_src>

<mosaic_0001>
module attributes {stable_mosaic.version = 11 : i64} {
  func.func @_ffn_kernel(%arg0: i32, %arg1: memref<2x256xf32, #tpu.memory_space<vmem>>, %arg2: memref<256x256xf32, #tpu.memory_space<vmem>>, %arg3: memref<1x256xf32, #tpu.memory_space<vmem>>, %arg4: memref<1x256xf32, #tpu.memory_space<vmem>>, %arg5: memref<1x256xf32, #tpu.memory_space<vmem>>, %arg6: memref<256x256xf32, #tpu.memory_space<vmem>>, %arg7: memref<2x256xf32, #tpu.memory_space<vmem>>) attributes {dimension_semantics = [#tpu.dimension_semantics<parallel>], iteration_bounds = array<i64: 1>, scalar_prefetch = 0 : i64, scratch_operands = 0 : i64, tpu.core_type = #tpu.core_type<tc>, window_params = [{transform_indices = @transform_0, window_bounds = array<i64: 2, 256>}, {pipeline_mode = #tpu.pipeline_mode<synchronous>, transform_indices = @transform_1, window_bounds = array<i64: 256, 256>}, {pipeline_mode = #tpu.pipeline_mode<synchronous>, transform_indices = @transform_2, window_bounds = array<i64: 1, 256>}, {pipeline_mode = #tpu.pipeline_mode<synchronous>, transform_indices = @transform_3, window_bounds = array<i64: 1, 256>}, {pipeline_mode = #tpu.pipeline_mode<synchronous>, transform_indices = @transform_4, window_bounds = array<i64: 1, 256>}, {pipeline_mode = #tpu.pipeline_mode<synchronous>, transform_indices = @transform_5, window_bounds = array<i64: 256, 256>}, {transform_indices = @transform_6, window_bounds = array<i64: 2, 256>}]} {
    %c0 = arith.constant 0 : index
    %c0_0 = arith.constant 0 : index
    %0 = vector.load %arg1[%c0, %c0_0] : memref<2x256xf32, #tpu.memory_space<vmem>>, vector<2x256xf32>
    %c0_1 = arith.constant 0 : index
    %c0_2 = arith.constant 0 : index
    %1 = vector.load %arg2[%c0_1, %c0_2] : memref<256x256xf32, #tpu.memory_space<vmem>>, vector<256x256xf32>
    %cst = arith.constant dense<0.000000e+00> : vector<2x256xf32>
    %2 = tpu.matmul %0, %1, %cst {dimension_numbers = #tpu.dot_dimension_numbers<[1], [0], [0], [1], [0, 0, 1, 1], [], []>} : vector<2x256xf32>, vector<256x256xf32>, vector<2x256xf32> -> vector<2x256xf32>
    %c0_3 = arith.constant 0 : index
    %c0_4 = arith.constant 0 : index
    %3 = vector.load %arg3[%c0_3, %c0_4] : memref<1x256xf32, #tpu.memory_space<vmem>>, vector<1x256xf32>
    %4 = vector.broadcast %3 : vector<1x256xf32> to vector<2x256xf32>
    %5 = arith.addf %2, %4 : vector<2x256xf32>
    %cst_5 = arith.constant 5.000000e-01 : f32
    %6 = vector.broadcast %cst_5 : f32 to vector<2x256xf32>
    %7 = arith.mulf %6, %5 : vector<2x256xf32>
    %8 = math.tanh %7 : vector<2x256xf32>
    %cst_6 = arith.constant 5.000000e-01 : f32
    %9 = vector.broadcast %cst_6 : f32 to vector<2x256xf32>
    %10 = arith.mulf %9, %8 : vector<2x256xf32>
    %cst_7 = arith.constant 5.000000e-01 : f32
    %11 = vector.broadcast %cst_7 : f32 to vector<2x256xf32>
    %12 = arith.addf %10, %11 : vector<2x256xf32>
    %c0_8 = arith.constant 0 : index
    %c0_9 = arith.constant 0 : index
    %13 = vector.load %arg1[%c0_8, %c0_9] : memref<2x256xf32, #tpu.memory_space<vmem>>, vector<2x256xf32>
    %14 = arith.addf %12, %13 : vector<2x256xf32>
    %c0_10 = arith.constant 0 : index
    %c0_11 = arith.constant 0 : index
    %15 = vector.load %arg6[%c0_10, %c0_11] : memref<256x256xf32, #tpu.memory_space<vmem>>, vector<256x256xf32>
    %cst_12 = arith.constant dense<0.000000e+00> : vector<2x256xf32>
    %16 = tpu.matmul %14, %15, %cst_12 {dimension_numbers = #tpu.dot_dimension_numbers<[1], [0], [0], [1], [0, 0, 1, 1], [], []>} : vector<2x256xf32>, vector<256x256xf32>, vector<2x256xf32> -> vector<2x256xf32>
    %17 = arith.mulf %14, %14 : vector<2x256xf32>
    %cst_13 = arith.constant dense<0.000000e+00> : vector<2x256xf32>
    %18 = tpu.matmul %17, %15, %cst_13 {dimension_numbers = #tpu.dot_dimension_numbers<[1], [0], [0], [1], [0, 0, 1, 1], [], []>} : vector<2x256xf32>, vector<256x256xf32>, vector<2x256xf32> -> vector<2x256xf32>
    %19 = arith.mulf %16, %16 : vector<2x256xf32>
    %20 = arith.subf %18, %19 : vector<2x256xf32>
    %21 = arith.subf %14, %16 : vector<2x256xf32>
    %cst_14 = arith.constant 9.99999974E-6 : f32
    %22 = vector.broadcast %cst_14 : f32 to vector<2x256xf32>
    %23 = arith.addf %20, %22 : vector<2x256xf32>
    %24 = math.rsqrt %23 : vector<2x256xf32>
    %25 = arith.mulf %21, %24 : vector<2x256xf32>
    %c0_15 = arith.constant 0 : index
    %c0_16 = arith.constant 0 : index
    %26 = vector.load %arg4[%c0_15, %c0_16] : memref<1x256xf32, #tpu.memory_space<vmem>>, vector<1x256xf32>
    %27 = vector.broadcast %26 : vector<1x256xf32> to vector<2x256xf32>
    %28 = arith.mulf %25, %27 : vector<2x256xf32>
    %c0_17 = arith.constant 0 : index
    %c0_18 = arith.constant 0 : index
    %29 = vector.load %arg5[%c0_17, %c0_18] : memref<1x256xf32, #tpu.memory_space<vmem>>, vector<1x256xf32>
    %30 = vector.broadcast %29 : vector<1x256xf32> to vector<2x256xf32>
    %31 = arith.addf %28, %30 : vector<2x256xf32>
    %c0_19 = arith.constant 0 : index
    %c0_20 = arith.constant 0 : index
    %32 = vector.load %arg7[%c0_19, %c0_20] : memref<2x256xf32, #tpu.memory_space<vmem>>, vector<2x256xf32>
    tpu.vector_store %arg7[%c0_19, %c0_20], %31 {strides = array<i32>} : memref<2x256xf32, #tpu.memory_space<vmem>>, vector<2x256xf32>,
    return
  }
  func.func @transform_0(%arg0: i32) -> (i32, i32) {
    %c0_i32 = arith.constant 0 : i32
    %c0_i32_0 = arith.constant 0 : i32
    return %arg0, %c0_i32 : i32, i32
  }
  func.func @transform_1(%arg0: i32) -> (i32, i32) {
    %c0_i32 = arith.constant 0 : i32
    %c0_i32_0 = arith.constant 0 : i32
    %c0_i32_1 = arith.constant 0 : i32
    return %c0_i32, %c0_i32_0 : i32, i32
  }
  func.func @transform_2(%arg0: i32) -> (i32, i32) {
    %c0_i32 = arith.constant 0 : i32
    %c0_i32_0 = arith.constant 0 : i32
    %c0_i32_1 = arith.constant 0 : i32
    return %c0_i32, %c0_i32_0 : i32, i32
  }
  func.func @transform_3(%arg0: i32) -> (i32, i32) {
    %c0_i32 = arith.constant 0 : i32
    %c0_i32_0 = arith.constant 0 : i32
    %c0_i32_1 = arith.constant 0 : i32
    return %c0_i32, %c0_i32_0 : i32, i32
  }
  func.func @transform_4(%arg0: i32) -> (i32, i32) {
    %c0_i32 = arith.constant 0 : i32
    %c0_i32_0 = arith.constant 0 : i32
    %c0_i32_1 = arith.constant 0 : i32
    return %c0_i32, %c0_i32_0 : i32, i32
  }
  func.func @transform_5(%arg0: i32) -> (i32, i32) {
    %c0_i32 = arith.constant 0 : i32
    %c0_i32_0 = arith.constant 0 : i32
    %c0_i32_1 = arith.constant 0 : i32
    return %c0_i32, %c0_i32_0 : i32, i32
  }
  func.func @transform_6(%arg0: i32) -> (i32, i32) {
    %c0_i32 = arith.constant 0 : i32
    %c0_i32_0 = arith.constant 0 : i32
    return %arg0, %c0_i32 : i32, i32
  }
}

</mosaic_0001>

<llo_original>
// kernel: tpu_custom_call.1
$region0: #{tpu_custom_call.1}
  #allocation0 [shape = 'u32[]', space=smem, size = 0x4, offset = 0x4, fixed_abs, tag = 'smem constant byte address 0x4 - core index']
  #allocation1 [shape = 'u32[144,128]{1,0:T(1,128)}', space=vmem, size = 0x12000, scoped, tag = 'internal scratch']
  %s0 = inlined_call_operand.hbm [shape: f32[2,256], index: 0, kind: input, shape index: {}]
  %s1 = inlined_call_operand.hbm [shape: f32[256,256], index: 1, kind: input, shape index: {}]
  %s2 = inlined_call_operand.vmem [shape: f32[1,256], index: 2, kind: input, shape index: {}]
  %s3 = inlined_call_operand.vmem [shape: f32[1,256], index: 3, kind: input, shape index: {}]
  %s4 = inlined_call_operand.vmem [shape: f32[1,256], index: 4, kind: input, shape index: {}]
  %s5 = inlined_call_operand.hbm [shape: f32[256,256], index: 5, kind: input, shape index: {}]
  %s6 = inlined_call_operand.hbm [shape: f32[2,256], index: 6, kind: output, shape index: {}]
  %s7 = sld [smem:[#allocation0]]
  $region46: #{tpu_custom_call.1} parent=0
    _
  %s9 = ssub.s32 1, %s7
  %s10 = scalar_select 0, %s9, %s7
  $region1: #{tpu_custom_call.1} parent=0
    #allocation2 [shape = 'u8[2048]{0}', space=vmem, size = 0x800, scoped, tag = 'input window, operand 0, single buffered']
    #allocation3 [shape = 's32[1]{0}', space=sflag, size = 0x4, scoped, tag = 'scoped memory for tpu_custom_call.1']
    #allocation4 [shape = 's32[1]{0}', space=sflag, size = 0x4, scoped, tag = 'scoped memory for tpu_custom_call.1']
    #allocation5 [shape = 'u8[262144]{0}', space=vmem, size = 0x40000, scoped, tag = 'input window, operand 1, single buffered']
    #allocation6 [shape = 's32[1]{0}', space=sflag, size = 0x4, scoped, tag = 'scoped memory for tpu_custom_call.1']
    #allocation7 [shape = 'u8[262144]{0}', space=vmem, size = 0x40000, scoped, tag = 'input window, operand 5, single buffered']
    #allocation8 [shape = 'u8[2048]{0}', space=vmem, size = 0x800, scoped, tag = 'output window, operand 0, single buffered']
    %11 = vsyncpa [#allocation3], 0
    %12 = vsyncpa [#allocation6], 0
    %13 = vsyncpa [#allocation4], 0
    // Predicated region
    $region2: #{tpu_custom_call.1} parent=1 // pred_check
      _
    $region3: #{tpu_custom_call.1} parent=1 // pred_check_branch
      %15 = sbr.rel (0) target = $region5
    $region4: #{tpu_custom_call.1} parent=1 // pred_region
      %s17 = ssub.s32 64, 64
      %18 = vsyncadd [#allocation3], %s17
      %s20 = sshll.u32 [#allocation2], 4
      %s21 = int_to_ptr.vmem [resolvable:$true] %s20
      %23 = dma.hbm_to_vmem [thread:$0]  %s0, 64, %s21, [#allocation3]
    $region5: #{tpu_custom_call.1} parent=1 // pred_fallthru
      _
    // Predicated region
    $region6: #{tpu_custom_call.1} parent=1 // pred_check
      _
    $region7: #{tpu_custom_call.1} parent=1 // pred_check_branch
      %25 = sbr.rel (0) target = $region9
    $region8: #{tpu_custom_call.1} parent=1 // pred_region
      %s27 = ssub.s32 8192, 8192
      %28 = vsyncadd [#allocation6], %s27
      %s29 = sshll.u32 [#allocation5], 4
      %s30 = int_to_ptr.vmem [resolvable:$true] %s29
      %35 = dma.hbm_to_vmem [thread:$0]  %s1, 8192, %s30, [#allocation6], 256, 256, 16
    $region9: #{tpu_custom_call.1} parent=1 // pred_fallthru
      _
    // Predicated region
    $region10: #{tpu_custom_call.1} parent=1 // pred_check
      _
    $region11: #{tpu_custom_call.1} parent=1 // pred_check_branch
      %37 = sbr.rel (0) target = $region13
    $region12: #{tpu_custom_call.1} parent=1 // pred_region
      _
    $region13: #{tpu_custom_call.1} parent=1 // pred_fallthru
      _
    // Predicated region
    $region14: #{tpu_custom_call.1} parent=1 // pred_check
      _
    $region15: #{tpu_custom_call.1} parent=1 // pred_check_branch
      %39 = sbr.rel (0) target = $region17
    $region16: #{tpu_custom_call.1} parent=1 // pred_region
      _
    $region17: #{tpu_custom_call.1} parent=1 // pred_fallthru
      _
    // Predicated region
    $region18: #{tpu_custom_call.1} parent=1 // pred_check
      _
    $region19: #{tpu_custom_call.1} parent=1 // pred_check_branch
      %41 = sbr.rel (0) target = $region21
    $region20: #{tpu_custom_call.1} parent=1 // pred_region
      _
    $region21: #{tpu_custom_call.1} parent=1 // pred_fallthru
      _
    // Predicated region
    $region22: #{tpu_custom_call.1} parent=1 // pred_check
      _
    $region23: #{tpu_custom_call.1} parent=1 // pred_check_branch
      %43 = sbr.rel (0) target = $region25
    $region24: #{tpu_custom_call.1} parent=1 // pred_region
      %s45 = ssub.s32 8192, 8192
      %46 = vsyncadd [#allocation6], %s45
      %s47 = sshll.u32 [#allocation7], 4
      %s48 = int_to_ptr.vmem [resolvable:$true] %s47
      %53 = dma.hbm_to_vmem [thread:$0]  %s5, 8192, %s48, [#allocation6], 256, 256, 16
    $region25: #{tpu_custom_call.1} parent=1 // pred_fallthru
      _
    // Predicated region
    $region26: #{tpu_custom_call.1} parent=1 // pred_check
      _
    $region27: #{tpu_custom_call.1} parent=1 // pred_check_branch
      %55 = sbr.rel (0) target = $region29
    $region28: #{tpu_custom_call.1} parent=1 // pred_region
      %56 = dma.done [#allocation3], 64
    $region29: #{tpu_custom_call.1} parent=1 // pred_fallthru
      _
    // Predicated region
    $region30: #{tpu_custom_call.1} parent=1 // pred_check
      _
    $region31: #{tpu_custom_call.1} parent=1 // pred_check_branch
      %58 = sbr.rel (0) target = $region33
    $region32: #{tpu_custom_call.1} parent=1 // pred_region
      %59 = dma.done [#allocation6], 8192
    $region33: #{tpu_custom_call.1} parent=1 // pred_fallthru
      _
    // Predicated region
    $region34: #{tpu_custom_call.1} parent=1 // pred_check
      _
    $region35: #{tpu_custom_call.1} parent=1 // pred_check_branch
      %61 = sbr.rel (0) target = $region37
    $region36: #{tpu_custom_call.1} parent=1 // pred_region
      %62 = dma.done [#allocation6], 8192
    $region37: #{tpu_custom_call.1} parent=1 // pred_fallthru
      _
    %v63 = vld [vmem:[#allocation2] sm:$0xf]
    %v64 = vld [vmem:[#allocation5] sm:$0xff]
    %v65 = vld [vmem:[#allocation5 + $0x8] sm:$0xff]
    %v66 = vld [vmem:[#allocation5 + $0x10] sm:$0xff]
    %v67 = vld [vmem:[#allocation5 + $0x18] sm:$0xff]
    %v68 = vld [vmem:[#allocation5 + $0x20] sm:$0xff]
    %v69 = vld [vmem:[#allocation5 + $0x28] sm:$0xff]
    %v70 = vld [vmem:[#allocation5 + $0x30] sm:$0xff]
    %v71 = vld [vmem:[#allocation5 + $0x38] sm:$0xff]
    %v72 = vld [vmem:[#allocation5 + $0x40] sm:$0xff]
    %v73 = vld [vmem:[#allocation5 + $0x48] sm:$0xff]
    %v74 = vld [vmem:[#allocation5 + $0x50] sm:$0xff]
    %v75 = vld [vmem:[#allocation5 + $0x58] sm:$0xff]
    %v76 = vld [vmem:[#allocation5 + $0x60] sm:$0xff]
    %v77 = vld [vmem:[#allocation5 + $0x68] sm:$0xff]
    %v78 = vld [vmem:[#allocation5 + $0x70] sm:$0xff]
    %v79 = vld [vmem:[#allocation5 + $0x78] sm:$0xff]
    %v80 = vld [vmem:[#allocation5 + $0x80] sm:$0xff]
    %v81 = vld [vmem:[#allocation5 + $0x88] sm:$0xff]
    %v82 = vld [vmem:[#allocation5 + $0x90] sm:$0xff]
    %v83 = vld [vmem:[#allocation5 + $0x98] sm:$0xff]
    %v84 = vld [vmem:[#allocation5 + $0xa0] sm:$0xff]
    %v85 = vld [vmem:[#allocation5 + $0xa8] sm:$0xff]
    %v86 = vld [vmem:[#allocation5 + $0xb0] sm:$0xff]
    %v87 = vld [vmem:[#allocation5 + $0xb8] sm:$0xff]
    %v88 = vld [vmem:[#allocation5 + $0xc0] sm:$0xff]
    %v89 = vld [vmem:[#allocation5 + $0xc8] sm:$0xff]
    %v90 = vld [vmem:[#allocation5 + $0xd0] sm:$0xff]
    %v91 = vld [vmem:[#allocation5 + $0xd8] sm:$0xff]
    %v92 = vld [vmem:[#allocation5 + $0xe0] sm:$0xff]
    %v93 = vld [vmem:[#allocation5 + $0xe8] sm:$0xff]
    %v94 = vld [vmem:[#allocation5 + $0xf0] sm:$0xff]
    %v95 = vld [vmem:[#allocation5 + $0xf8] sm:$0xff]
    %v96 = vld [vmem:[#allocation5 + $0x100] sm:$0xff]
    %v97 = vld [vmem:[#allocation5 + $0x108] sm:$0xff]
    %v98 = vld [vmem:[#allocation5 + $0x110] sm:$0xff]
    %v99 = vld [vmem:[#allocation5 + $0x118] sm:$0xff]
    %v100 = vld [vmem:[#allocation5 + $0x120] sm:$0xff]
    %v101 = vld [vmem:[#allocation5 + $0x128] sm:$0xff]
    %v102 = vld [vmem:[#allocation5 + $0x130] sm:$0xff]
    %v103 = vld [vmem:[#allocation5 + $0x138] sm:$0xff]
    %v104 = vld [vmem:[#allocation5 + $0x140] sm:$0xff]
    %v105 = vld [vmem:[#allocation5 + $0x148] sm:$0xff]
    %v106 = vld [vmem:[#allocation5 + $0x150] sm:$0xff]
    %v107 = vld [vmem:[#allocation5 + $0x158] sm:$0xff]
    %v108 = vld [vmem:[#allocation5 + $0x160] sm:$0xff]
    %v109 = vld [vmem:[#allocation5 + $0x168] sm:$0xff]
    %v110 = vld [vmem:[#allocation5 + $0x170] sm:$0xff]
    %v111 = vld [vmem:[#allocation5 + $0x178] sm:$0xff]
    %v112 = vld [vmem:[#allocation5 + $0x180] sm:$0xff]
    %v113 = vld [vmem:[#allocation5 + $0x188] sm:$0xff]
    %v114 = vld [vmem:[#allocation5 + $0x190] sm:$0xff]
    %v115 = vld [vmem:[#allocation5 + $0x198] sm:$0xff]
    %v116 = vld [vmem:[#allocation5 + $0x1a0] sm:$0xff]
    %v117 = vld [vmem:[#allocation5 + $0x1a8] sm:$0xff]
    %v118 = vld [vmem:[#allocation5 + $0x1b0] sm:$0xff]
    %v119 = vld [vmem:[#allocation5 + $0x1b8] sm:$0xff]
    %v120 = vld [vmem:[#allocation5 + $0x1c0] sm:$0xff]
    %v121 = vld [vmem:[#allocation5 + $0x1c8] sm:$0xff]
    %v122 = vld [vmem:[#allocation5 + $0x1d0] sm:$0xff]
    %v123 = vld [vmem:[#allocation5 + $0x1d8] sm:$0xff]
    %v124 = vld [vmem:[#allocation5 + $0x1e0] sm:$0xff]
    %v125 = vld [vmem:[#allocation5 + $0x1e8] sm:$0xff]
    %v126 = vld [vmem:[#allocation5 + $0x1f0] sm:$0xff]
    %v127 = vld [vmem:[#allocation5 + $0x1f8] sm:$0xff]
    %v128 = vld [vmem:[%s2] sm:$0x3]
    %v130 = vlaneseq
    %v131 = vshrl.u32 %v130, 7
    %v132 = vsub.s32 0, %v131
    %v133 = vrot.slane %v128, %v132
    %v134 = vlaneseq
    %v135 = vshrl.u32 %v134, 7
    %v136 = vsub.s32 1, %v135
    %v137 = vrot.slane %v128, %v136
    %v142 = vunpack.c.l.s4 1983009808
    %v143 = vunpack.c.0.s8 %v142
    %v144 = vlaneseq
    %v145 = vshrl.u32 %v144, 7
    %v146 = vsub.s32 %v143, %v145
    %v147 = vrot.slane %v63, %v146
    %v148 = vcombine.high %v147, %v147
    %151 = vmatprep.subr.mxu0 %v65
    %152 = vmatpush1.msra.mxu0 %v64
    %153 = vmatprep.subr.mxu0 %v67
    %154 = vmatpush1.msra.mxu0 %v66
    %155 = vmatprep.subr.mxu0 %v69
    %156 = vmatpush1.msra.mxu0 %v68
    %157 = vmatprep.subr.mxu0 %v71
    %158 = vmatpush1.msra.mxu0 %v70
    %159 = vmatprep.subr.mxu0 %v73
    %160 = vmatpush1.msra.mxu0 %v72
    %161 = vmatprep.subr.mxu0 %v75
    %162 = vmatpush1.msra.mxu0 %v74
    %163 = vmatprep.subr.mxu0 %v77
    %164 = vmatpush1.msra.mxu0 %v76
    %165 = vmatprep.subr.mxu0 %v79
    %166 = vmatpush1.msra.mxu0 %v78
    %167 = vmatprep.subr.mxu0 %v81
    %168 = vmatpush1.msra.mxu0 %v80
    %169 = vmatprep.subr.mxu0 %v83
    %170 = vmatpush1.msra.mxu0 %v82
    %171 = vmatprep.subr.mxu0 %v85
    %172 = vmatpush1.msra.mxu0 %v84
    %173 = vmatprep.subr.mxu0 %v87
    %174 = vmatpush1.msra.mxu0 %v86
    %175 = vmatprep.subr.mxu0 %v89
    %176 = vmatpush1.msra.mxu0 %v88
    %177 = vmatprep.subr.mxu0 %v91
    %178 = vmatpush1.msra.mxu0 %v90
    %179 = vmatprep.subr.mxu0 %v93
    %180 = vmatpush1.msra.mxu0 %v92
    %181 = vmatprep.subr.mxu0 %v95
    %182 = vmatpush1.msra.mxu0 %v94
    %183 = vmatprep.subr.mxu0 %v97
    %184 = vmatpush1.msra.mxu0 %v96
    %185 = vmatprep.subr.mxu0 %v99
    %186 = vmatpush1.msra.mxu0 %v98
    %187 = vmatprep.subr.mxu0 %v101
    %188 = vmatpush1.msra.mxu0 %v100
    %189 = vmatprep.subr.mxu0 %v103
    %190 = vmatpush1.msra.mxu0 %v102
    %191 = vmatprep.subr.mxu0 %v105
    %192 = vmatpush1.msra.mxu0 %v104
    %193 = vmatprep.subr.mxu0 %v107
    %194 = vmatpush1.msra.mxu0 %v106
    %195 = vmatprep.subr.mxu0 %v109
    %196 = vmatpush1.msra.mxu0 %v108
    %197 = vmatprep.subr.mxu0 %v111
    %198 = vmatpush1.msra.mxu0 %v110
    %199 = vmatprep.subr.mxu0 %v113
    %200 = vmatpush1.msra.mxu0 %v112
    %201 = vmatprep.subr.mxu0 %v115
    %202 = vmatpush1.msra.mxu0 %v114
    %203 = vmatprep.subr.mxu0 %v117
    %204 = vmatpush1.msra.mxu0 %v116
    %205 = vmatprep.subr.mxu0 %v119
    %206 = vmatpush1.msra.mxu0 %v118
    %207 = vmatprep.subr.mxu0 %v121
    %208 = vmatpush1.msra.mxu0 %v120
    %209 = vmatprep.subr.mxu0 %v123
    %210 = vmatpush1.msra.mxu0 %v122
    %211 = vmatprep.subr.mxu0 %v125
    %212 = vmatpush1.msra.mxu0 %v124
    %213 = vmatprep.subr.mxu0 %v127
    %214 = vmatpush1.msra.mxu0 %v126
    %215 = vmatprep.mubr.f32.mxu0 %v148
    %216 = vmatmul.mubr.f32.gmra.mrb[0].mxu0 %v147
    %v217 = vpop.f32.mrb[0].mxu0
    %v218 = vadd.f32 %v133, %v217
    %v219 = vpop.f32.mrb[0].mxu0
    %v220 = vadd.f32 %v137, %v219
    %221 = vdwg.mxu0
    %v222 = vmul.f32 %v218, 0.5
    %v223 = vmul.f32 %v220, 0.5
    %v224 = vtanh.pop %v222
    %v225 = vtanh.pop %v223
    %v226 = vmul.f32 %v224, 0.5
    %v227 = vmul.f32 %v225, 0.5
    %v228 = vadd.f32 %v226, 0.5
    %v229 = vadd.f32 %v227, 0.5
    %v230 = vadd.f32 %v228, %v147
    %v231 = vadd.f32 %v229, %v148
    %v232 = vld [vmem:[#allocation7] sm:$0xff]
    %v233 = vld [vmem:[#allocation7 + $0x8] sm:$0xff]
    %v234 = vld [vmem:[#allocation7 + $0x10] sm:$0xff]
    %v235 = vld [vmem:[#allocation7 + $0x18] sm:$0xff]
    %v236 = vld [vmem:[#allocation7 + $0x20] sm:$0xff]
    %v237 = vld [vmem:[#allocation7 + $0x28] sm:$0xff]
    %v238 = vld [vmem:[#allocation7 + $0x30] sm:$0xff]
    %v239 = vld [vmem:[#allocation7 + $0x38] sm:$0xff]
    %v240 = vld [vmem:[#allocation7 + $0x40] sm:$0xff]
    %v241 = vld [vmem:[#allocation7 + $0x48] sm:$0xff]
    %v242 = vld [vmem:[#allocation7 + $0x50] sm:$0xff]
    %v243 = vld [vmem:[#allocation7 + $0x58] sm:$0xff]
    %v244 = vld [vmem:[#allocation7 + $0x60] sm:$0xff]
    %v245 = vld [vmem:[#allocation7 + $0x68] sm:$0xff]
    %v246 = vld [vmem:[#allocation7 + $0x70] sm:$0xff]
    %v247 = vld [vmem:[#allocation7 + $0x78] sm:$0xff]
    %v248 = vld [vmem:[#allocation7 + $0x80] sm:$0xff]
    %v249 = vld [vmem:[#allocation7 + $0x88] sm:$0xff]
    %v250 = vld [vmem:[#allocation7 + $0x90] sm:$0xff]
    %v251 = vld [vmem:[#allocation7 + $0x98] sm:$0xff]
    %v252 = vld [vmem:[#allocation7 + $0xa0] sm:$0xff]
    %v253 = vld [vmem:[#allocation7 + $0xa8] sm:$0xff]
    %v254 = vld [vmem:[#allocation7 + $0xb0] sm:$0xff]
    %v255 = vld [vmem:[#allocation7 + $0xb8] sm:$0xff]
    %v256 = vld [vmem:[#allocation7 + $0xc0] sm:$0xff]
    %v257 = vld [vmem:[#allocation7 + $0xc8] sm:$0xff]
    %v258 = vld [vmem:[#allocation7 + $0xd0] sm:$0xff]
    %v259 = vld [vmem:[#allocation7 + $0xd8] sm:$0xff]
    %v260 = vld [vmem:[#allocation7 + $0xe0] sm:$0xff]
    %v261 = vld [vmem:[#allocation7 + $0xe8] sm:$0xff]
    %v262 = vld [vmem:[#allocation7 + $0xf0] sm:$0xff]
    %v263 = vld [vmem:[#allocation7 + $0xf8] sm:$0xff]
    %v264 = vld [vmem:[#allocation7 + $0x100] sm:$0xff]
    %v265 = vld [vmem:[#allocation7 + $0x108] sm:$0xff]
    %v266 = vld [vmem:[#allocation7 + $0x110] sm:$0xff]
    %v267 = vld [vmem:[#allocation7 + $0x118] sm:$0xff]
    %v268 = vld [vmem:[#allocation7 + $0x120] sm:$0xff]
    %v269 = vld [vmem:[#allocation7 + $0x128] sm:$0xff]
    %v270 = vld [vmem:[#allocation7 + $0x130] sm:$0xff]
    %v271 = vld [vmem:[#allocation7 + $0x138] sm:$0xff]
    %v272 = vld [vmem:[#allocation7 + $0x140] sm:$0xff]
    %v273 = vld [vmem:[#allocation7 + $0x148] sm:$0xff]
    %v274 = vld [vmem:[#allocation7 + $0x150] sm:$0xff]
    %v275 = vld [vmem:[#allocation7 + $0x158] sm:$0xff]
    %v276 = vld [vmem:[#allocation7 + $0x160] sm:$0xff]
    %v277 = vld [vmem:[#allocation7 + $0x168] sm:$0xff]
    %v278 = vld [vmem:[#allocation7 + $0x170] sm:$0xff]
    %v279 = vld [vmem:[#allocation7 + $0x178] sm:$0xff]
    %v280 = vld [vmem:[#allocation7 + $0x180] sm:$0xff]
    %v281 = vld [vmem:[#allocation7 + $0x188] sm:$0xff]
    %v282 = vld [vmem:[#allocation7 + $0x190] sm:$0xff]
    %v283 = vld [vmem:[#allocation7 + $0x198] sm:$0xff]
    %v284 = vld [vmem:[#allocation7 + $0x1a0] sm:$0xff]
    %v285 = vld [vmem:[#allocation7 + $0x1a8] sm:$0xff]
    %v286 = vld [vmem:[#allocation7 + $0x1b0] sm:$0xff]
    %v287 = vld [vmem:[#allocation7 + $0x1b8] sm:$0xff]
    %v288 = vld [vmem:[#allocation7 + $0x1c0] sm:$0xff]
    %v289 = vld [vmem:[#allocation7 + $0x1c8] sm:$0xff]
    %v290 = vld [vmem:[#allocation7 + $0x1d0] sm:$0xff]
    %v291 = vld [vmem:[#allocation7 + $0x1d8] sm:$0xff]
    %v292 = vld [vmem:[#allocation7 + $0x1e0] sm:$0xff]
    %v293 = vld [vmem:[#allocation7 + $0x1e8] sm:$0xff]
    %v294 = vld [vmem:[#allocation7 + $0x1f0] sm:$0xff]
    %v295 = vld [vmem:[#allocation7 + $0x1f8] sm:$0xff]
    %296 = vmatprep.subr.mxu0 %v233
    %297 = vmatpush1.msra.mxu0 %v232
    %298 = vmatprep.subr.mxu0 %v235
    %299 = vmatpush1.msra.mxu0 %v234
    %300 = vmatprep.subr.mxu0 %v237
    %301 = vmatpush1.msra.mxu0 %v236
    %302 = vmatprep.subr.mxu0 %v239
    %303 = vmatpush1.msra.mxu0 %v238
    %304 = vmatprep.subr.mxu0 %v241
    %305 = vmatpush1.msra.mxu0 %v240
    %306 = vmatprep.subr.mxu0 %v243
    %307 = vmatpush1.msra.mxu0 %v242
    %308 = vmatprep.subr.mxu0 %v245
    %309 = vmatpush1.msra.mxu0 %v244
    %310 = vmatprep.subr.mxu0 %v247
    %311 = vmatpush1.msra.mxu0 %v246
    %312 = vmatprep.subr.mxu0 %v249
    %313 = vmatpush1.msra.mxu0 %v248
    %314 = vmatprep.subr.mxu0 %v251
    %315 = vmatpush1.msra.mxu0 %v250
    %316 = vmatprep.subr.mxu0 %v253
    %317 = vmatpush1.msra.mxu0 %v252
    %318 = vmatprep.subr.mxu0 %v255
    %319 = vmatpush1.msra.mxu0 %v254
    %320 = vmatprep.subr.mxu0 %v257
    %321 = vmatpush1.msra.mxu0 %v256
    %322 = vmatprep.subr.mxu0 %v259
    %323 = vmatpush1.msra.mxu0 %v258
    %324 = vmatprep.subr.mxu0 %v261
    %325 = vmatpush1.msra.mxu0 %v260
    %326 = vmatprep.subr.mxu0 %v263
    %327 = vmatpush1.msra.mxu0 %v262
    %328 = vmatprep.subr.mxu0 %v265
    %329 = vmatpush1.msra.mxu0 %v264
    %330 = vmatprep.subr.mxu0 %v267
    %331 = vmatpush1.msra.mxu0 %v266
    %332 = vmatprep.subr.mxu0 %v269
    %333 = vmatpush1.msra.mxu0 %v268
    %334 = vmatprep.subr.mxu0 %v271
    %335 = vmatpush1.msra.mxu0 %v270
    %336 = vmatprep.subr.mxu0 %v273
    %337 = vmatpush1.msra.mxu0 %v272
    %338 = vmatprep.subr.mxu0 %v275
    %339 = vmatpush1.msra.mxu0 %v274
    %340 = vmatprep.subr.mxu0 %v277
    %341 = vmatpush1.msra.mxu0 %v276
    %342 = vmatprep.subr.mxu0 %v279
    %343 = vmatpush1.msra.mxu0 %v278
    %344 = vmatprep.subr.mxu0 %v281
    %345 = vmatpush1.msra.mxu0 %v280
    %346 = vmatprep.subr.mxu0 %v283
    %347 = vmatpush1.msra.mxu0 %v282
    %348 = vmatprep.subr.mxu0 %v285
    %349 = vmatpush1.msra.mxu0 %v284
    %350 = vmatprep.subr.mxu0 %v287
    %351 = vmatpush1.msra.mxu0 %v286
    %352 = vmatprep.subr.mxu0 %v289
    %353 = vmatpush1.msra.mxu0 %v288
    %354 = vmatprep.subr.mxu0 %v291
    %355 = vmatpush1.msra.mxu0 %v290
    %356 = vmatprep.subr.mxu0 %v293
    %357 = vmatpush1.msra.mxu0 %v292
    %358 = vmatprep.subr.mxu0 %v295
    %359 = vmatpush1.msra.mxu0 %v294
    %360 = vmatprep.mubr.f32.mxu0 %v231
    %361 = vmatmul.mubr.f32.gmra.mrb[0].mxu0 %v230
    %v362 = vpop.f32.mrb[0].mxu0
    %v363 = vadd.f32 0.0, %v362
    %v364 = vpop.f32.mrb[0].mxu0
    %v365 = vadd.f32 0.0, %v364
    %366 = vdwg.mxu0
    %v367 = vmul.f32 %v230, %v230
    %v368 = vmul.f32 %v231, %v231
    %369 = vmatprep.subr.mxu0 %v233
    %370 = vmatpush1.msra.mxu0 %v232
    %371 = vmatprep.subr.mxu0 %v235
    %372 = vmatpush1.msra.mxu0 %v234
    %373 = vmatprep.subr.mxu0 %v237
    %374 = vmatpush1.msra.mxu0 %v236
    %375 = vmatprep.subr.mxu0 %v239
    %376 = vmatpush1.msra.mxu0 %v238
    %377 = vmatprep.subr.mxu0 %v241
    %378 = vmatpush1.msra.mxu0 %v240
    %379 = vmatprep.subr.mxu0 %v243
    %380 = vmatpush1.msra.mxu0 %v242
    %381 = vmatprep.subr.mxu0 %v245
    %382 = vmatpush1.msra.mxu0 %v244
    %383 = vmatprep.subr.mxu0 %v247
    %384 = vmatpush1.msra.mxu0 %v246
    %385 = vmatprep.subr.mxu0 %v249
    %386 = vmatpush1.msra.mxu0 %v248
    %387 = vmatprep.subr.mxu0 %v251
    %388 = vmatpush1.msra.mxu0 %v250
    %389 = vmatprep.subr.mxu0 %v253
    %390 = vmatpush1.msra.mxu0 %v252
    %391 = vmatprep.subr.mxu0 %v255
    %392 = vmatpush1.msra.mxu0 %v254
    %393 = vmatprep.subr.mxu0 %v257
    %394 = vmatpush1.msra.mxu0 %v256
    %395 = vmatprep.subr.mxu0 %v259
    %396 = vmatpush1.msra.mxu0 %v258
    %397 = vmatprep.subr.mxu0 %v261
    %398 = vmatpush1.msra.mxu0 %v260
    %399 = vmatprep.subr.mxu0 %v263
    %400 = vmatpush1.msra.mxu0 %v262
    %401 = vmatprep.subr.mxu0 %v265
    %402 = vmatpush1.msra.mxu0 %v264
    %403 = vmatprep.subr.mxu0 %v267
    %404 = vmatpush1.msra.mxu0 %v266
    %405 = vmatprep.subr.mxu0 %v269
    %406 = vmatpush1.msra.mxu0 %v268
    %407 = vmatprep.subr.mxu0 %v271
    %408 = vmatpush1.msra.mxu0 %v270
    %409 = vmatprep.subr.mxu0 %v273
    %410 = vmatpush1.msra.mxu0 %v272
    %411 = vmatprep.subr.mxu0 %v275
    %412 = vmatpush1.msra.mxu0 %v274
    %413 = vmatprep.subr.mxu0 %v277
    %414 = vmatpush1.msra.mxu0 %v276
    %415 = vmatprep.subr.mxu0 %v279
    %416 = vmatpush1.msra.mxu0 %v278
    %417 = vmatprep.subr.mxu0 %v281
    %418 = vmatpush1.msra.mxu0 %v280
    %419 = vmatprep.subr.mxu0 %v283
    %420 = vmatpush1.msra.mxu0 %v282
    %421 = vmatprep.subr.mxu0 %v285
    %422 = vmatpush1.msra.mxu0 %v284
    %423 = vmatprep.subr.mxu0 %v287
    %424 = vmatpush1.msra.mxu0 %v286
    %425 = vmatprep.subr.mxu0 %v289
    %426 = vmatpush1.msra.mxu0 %v288
    %427 = vmatprep.subr.mxu0 %v291
    %428 = vmatpush1.msra.mxu0 %v290
    %429 = vmatprep.subr.mxu0 %v293
    %430 = vmatpush1.msra.mxu0 %v292
    %431 = vmatprep.subr.mxu0 %v295
    %432 = vmatpush1.msra.mxu0 %v294
    %433 = vmatprep.mubr.f32.mxu0 %v368
    %434 = vmatmul.mubr.f32.gmra.mrb[0].mxu0 %v367
    %v435 = vpop.f32.mrb[0].mxu0
    %v436 = vadd.f32 0.0, %v435
    %v437 = vpop.f32.mrb[0].mxu0
    %v438 = vadd.f32 0.0, %v437
    %439 = vdwg.mxu0
    %v440 = vmul.f32 %v363, %v363
    %v441 = vmul.f32 %v365, %v365
    %v442 = vsub.f32 %v436, %v440
    %v443 = vsub.f32 %v438, %v441
    %v444 = vsub.f32 %v230, %v363
    %v445 = vsub.f32 %v231, %v365
    %v446 = vadd.f32 %v442, 1e-05
    %v447 = vadd.f32 %v443, 1e-05
    %v448 = vrsqrt.pop %v446
    %v449 = vrsqrt.pop %v447
    %v450 = vmul.f32 %v444, %v448
    %v451 = vmul.f32 %v445, %v449
    %v452 = vld [vmem:[%s3] sm:$0x3]
    %v454 = vlaneseq
    %v455 = vshrl.u32 %v454, 7
    %v456 = vsub.s32 0, %v455
    %v457 = vrot.slane %v452, %v456
    %v458 = vlaneseq
    %v459 = vshrl.u32 %v458, 7
    %v460 = vsub.s32 1, %v459
    %v461 = vrot.slane %v452, %v460
    %v464 = vmul.f32 %v450, %v457
    %v465 = vmul.f32 %v451, %v461
    %v466 = vld [vmem:[%s4] sm:$0x3]
    %v468 = vlaneseq
    %v469 = vshrl.u32 %v468, 7
    %v470 = vsub.s32 0, %v469
    %v471 = vrot.slane %v466, %v470
    %v472 = vlaneseq
    %v473 = vshrl.u32 %v472, 7
    %v474 = vsub.s32 1, %v473
    %v475 = vrot.slane %v466, %v474
    %v478 = vadd.f32 %v464, %v471
    %v479 = vadd.f32 %v465, %v475
    %v482 = vcombine.low %v478, %v479
    %v484 = vunpack.c.l.s4 1983009808
    %v485 = vunpack.c.0.s8 %v484
    %v486 = vlaneseq
    %v487 = vshrl.u32 %v486, 7
    %v488 = vsub.s32 %v485, %v487
    %v489 = vrot.slane %v482, %v488
    %491 = vst [vmem:[#allocation8] sm:$0xf] %v489
    // Predicated region
    $region38: #{tpu_custom_call.1} parent=1 // pred_check
      _
    $region39: #{tpu_custom_call.1} parent=1 // pred_check_branch
      %493 = sbr.rel (0) target = $region41
    $region40: #{tpu_custom_call.1} parent=1 // pred_region
      %s495 = ssub.s32 64, 64
      %496 = vsyncadd [#allocation4], %s495
      %s498 = sshll.u32 [#allocation8], 4
      %s499 = int_to_ptr.vmem [resolvable:$true] %s498
      %501 = dma.vmem_to_hbm [thread:$0]  %s499, 64, %s6, [#allocation4]
    $region41: #{tpu_custom_call.1} parent=1 // pred_fallthru
      _
    // Predicated region
    $region42: #{tpu_custom_call.1} parent=1 // pred_check
      _
    $region43: #{tpu_custom_call.1} parent=1 // pred_check_branch
      %503 = sbr.rel (0) target = $region45
    $region44: #{tpu_custom_call.1} parent=1 // pred_region
      %504 = dma.done [#allocation4], 64
    $region45: #{tpu_custom_call.1} parent=1 // pred_fallthru
      _
    %505 = vsyncpa [#allocation3], 1
    %506 = vsyncpa [#allocation6], 1
    %507 = vsyncpa [#allocation4], 1

</llo_original>
